<compile_context>
chip_gen: v5e
topology: v5e:2x2
jax: 0.10.0
libtpu: 0.0.40
codegen_flags: <defaults>
</compile_context>

<pallas_src>
import math

import jax
import jax.numpy as jnp
from jax import lax
from jax.experimental import pallas as pl
from jax.experimental.pallas import tpu as pltpu


def _round_up(x, m):
    return (x + m - 1) // m * m


def _linear_lora_kernel(alpha_ref, x_ref, w_ref, b_ref, a_ref, bb_ref, o_ref,
                        acc_ref, xa_ref):
    k = pl.program_id(2)

    @pl.when(k == 0)
    def _init():
        acc_ref[...] = jnp.zeros_like(acc_ref)
        xa_ref[...] = jnp.zeros_like(xa_ref)

    x = x_ref[...]                                               # (tm, tk)
    # Frozen linear path: contract x's feature dim with W's last dim
    # (W tile stays in its native (tn, tk) = (out, in) layout).
    acc_ref[...] += lax.dot_general(
        x, w_ref[...],
        dimension_numbers=(((1,), (1,)), ((), ())),
        preferred_element_type=jnp.float32)                      # (tm, tn)
    # LoRA down-projection, accumulated over K tiles.
    xa_ref[...] += jnp.dot(x, a_ref[...],
                           preferred_element_type=jnp.float32)   # (tm, rank)

    @pl.when(k == pl.num_programs(2) - 1)
    def _finalize():
        alpha = alpha_ref[0, 0]
        lora = jnp.dot(alpha * xa_ref[...], bb_ref[...],
                       preferred_element_type=jnp.float32)       # (tm, tn)
        out = acc_ref[...] + b_ref[...] + lora                   # bias once
        o_ref[...] = out.astype(o_ref.dtype)


def linear_with_lora(x, w, b, a_lora, b_lora, alpha, *, tm=None, tn=None, tk=None):
    """x: (batch, seq, in_features) -> (batch, seq, out_features)."""
    batch, seq, in_dim = x.shape
    out_dim, w_in = w.shape
    assert w_in == in_dim
    rank = a_lora.shape[1]
    m = batch * seq

    # Tile sizes: MXU/lane aligned, capped so small problems stay single-tile.
    if tm is None:
        tm = min(256, _round_up(m, 8))
    if tn is None:
        tn = min(512, _round_up(out_dim, 128))
    if tk is None:
        tk = min(512, _round_up(in_dim, 128))

    mp = _round_up(m, tm)
    np_ = _round_up(out_dim, tn)
    kp = _round_up(in_dim, tk)

    x2d = x.reshape(m, in_dim)
    x2d = jnp.pad(x2d, ((0, mp - m), (0, kp - in_dim)))
    w_p = jnp.pad(w, ((0, np_ - out_dim), (0, kp - in_dim)))       # (Np, Kp)
    b_p = jnp.pad(b, (0, np_ - out_dim)).reshape(1, np_)           # (1, Np)
    a_p = jnp.pad(a_lora, ((0, kp - in_dim), (0, 0)))              # (Kp, r)
    bb_p = jnp.pad(b_lora, ((0, 0), (0, np_ - out_dim)))           # (r, Np)
    alpha_arr = jnp.full((1, 1), alpha, dtype=jnp.float32)

    grid = (mp // tm, np_ // tn, kp // tk)

    out_padded = pl.pallas_call(
        _linear_lora_kernel,
        out_shape=jax.ShapeDtypeStruct((mp, np_), x.dtype),
        grid=grid,
        in_specs=[
            pl.BlockSpec(memory_space=pltpu.MemorySpace.SMEM),     # alpha
            pl.BlockSpec((tm, tk), lambda i, j, k: (i, k)),        # x
            pl.BlockSpec((tn, tk), lambda i, j, k: (j, k)),        # W (out, in)
            pl.BlockSpec((1, tn), lambda i, j, k: (0, j)),         # bias
            pl.BlockSpec((tk, rank), lambda i, j, k: (k, 0)),      # A
            pl.BlockSpec((rank, tn), lambda i, j, k: (0, j)),      # B
        ],
        out_specs=pl.BlockSpec((tm, tn), lambda i, j, k: (i, j)),
        scratch_shapes=[
            pltpu.VMEM((tm, tn), jnp.float32),     # base + LoRA accumulator
            pltpu.VMEM((tm, rank), jnp.float32),   # x @ A accumulator
        ],
        compiler_params=pltpu.CompilerParams(
            dimension_semantics=("parallel", "parallel", "arbitrary")),
    )(alpha_arr, x2d, w_p, b_p, a_p, bb_p)

    return out_padded[:m, :out_dim].reshape(batch, seq, out_dim)


def _reference(x, w, b, a_lora, b_lora, alpha):
    base = jnp.einsum("bsi,oi->bso", x, w) + b
    lora = alpha * jnp.einsum("bsi,ir,ro->bso", x, a_lora, b_lora)
    return base + lora


def _check(out, ref, atol, rtol):
    assert out.shape == ref.shape
    err = jnp.max(jnp.abs(out - ref))
    assert jnp.allclose(out, ref, atol=atol, rtol=rtol), f"mismatch, max abs err={err}"


if __name__ == "__main__":
    key = jax.random.PRNGKey(0)

    # ---- Test 1: module defaults (Linear(32, 32), rank=4, B == 0) ----------
    batch, seq, in_dim, out_dim, rank = 2, 8, 32, 32, 4
    alpha = 16.0
    kx, kw, kb, ka = jax.random.split(key, 4)
    x = jax.random.normal(kx, (batch, seq, in_dim), dtype=jnp.float32)
    lim = 1.0 / math.sqrt(in_dim)
    w = jax.random.uniform(kw, (out_dim, in_dim), jnp.float32, -lim, lim)
    b = jax.random.uniform(kb, (out_dim,), jnp.float32, -lim, lim)
    # LoRA A: kaiming_uniform_(a=sqrt(5)) on (in_dim, rank); B: zeros, as in __init__.
    bound = math.sqrt(6.0 / ((1.0 + 5.0) * rank))
    a_lora = jax.random.uniform(ka, (in_dim, rank), jnp.float32, -bound, bound)
    b_lora = jnp.zeros((rank, out_dim), jnp.float32)

    out = jax.block_until_ready(linear_with_lora(x, w, b, a_lora, b_lora, alpha))
    _check(out, _reference(x, w, b, a_lora, b_lora, alpha), atol=1e-5, rtol=1e-5)

    # ---- Test 2: nonzero B, multi-tile grid (exercises M/N/K accumulation) --
    batch2, seq2, in2, out2, rank2 = 2, 24, 256, 384, 4
    k1, k2, k3, k4, k5 = jax.random.split(jax.random.PRNGKey(1), 5)
    x2 = jax.random.normal(k1, (batch2, seq2, in2), dtype=jnp.float32)
    w2 = jax.random.normal(k2, (out2, in2), dtype=jnp.float32) * 0.02
    b2 = jax.random.normal(k3, (out2,), dtype=jnp.float32) * 0.02
    a2 = jax.random.normal(k4, (in2, rank2), dtype=jnp.float32) * 0.1
    bb2 = jax.random.normal(k5, (rank2, out2), dtype=jnp.float32) * 0.1

    out2_ = jax.block_until_ready(
        linear_with_lora(x2, w2, b2, a2, bb2, alpha, tm=16, tn=128, tk=128))
    _check(out2_, _reference(x2, w2, b2, a2, bb2, alpha), atol=2e-3, rtol=2e-3)

    print("KERNEL_OK")
</pallas_src>

<mosaic_0001>
module attributes {stable_mosaic.version = 11 : i64} {
  func.func @_linear_lora_kernel(%arg0: i32, %arg1: i32, %arg2: i32, %arg3: memref<1x1xf32, #tpu.memory_space<smem>>, %arg4: memref<16x128xf32, #tpu.memory_space<vmem>>, %arg5: memref<128x128xf32, #tpu.memory_space<vmem>>, %arg6: memref<1x128xf32, #tpu.memory_space<vmem>>, %arg7: memref<128x4xf32, #tpu.memory_space<vmem>>, %arg8: memref<4x128xf32, #tpu.memory_space<vmem>>, %arg9: memref<16x128xf32, #tpu.memory_space<vmem>>, %arg10: memref<16x128xf32, #tpu.memory_space<vmem>>, %arg11: memref<16x4xf32, #tpu.memory_space<vmem>>) attributes {dimension_semantics = [#tpu.dimension_semantics<parallel>, #tpu.dimension_semantics<parallel>, #tpu.dimension_semantics<arbitrary>], iteration_bounds = array<i64: 1, 1, 1>, scalar_prefetch = 0 : i64, scratch_operands = 2 : i64, tpu.core_type = #tpu.core_type<tc>, window_params = [{transform_indices = @transform_0, window_bounds = array<i64: 1, 1>}, {transform_indices = @transform_1, window_bounds = array<i64: 16, 128>}, {transform_indices = @transform_2, window_bounds = array<i64: 128, 128>}, {transform_indices = @transform_3, window_bounds = array<i64: 1, 128>}, {transform_indices = @transform_4, window_bounds = array<i64: 128, 4>}, {transform_indices = @transform_5, window_bounds = array<i64: 4, 128>}, {transform_indices = @transform_6, window_bounds = array<i64: 16, 128>}]} {
    %c0_i32 = arith.constant 0 : i32
    %0 = arith.cmpi eq, %arg2, %c0_i32 : i32
    %1 = arith.extui %0 : i1 to i32
    %c0_i32_0 = arith.constant 0 : i32
    %2 = arith.cmpi ne, %1, %c0_i32_0 : i32
    scf.if %2 {
      %cst_17 = arith.constant 0.000000e+00 : f32
      %17 = vector.broadcast %cst_17 : f32 to vector<16x128xf32>
      %c0_18 = arith.constant 0 : index
      %c0_19 = arith.constant 0 : index
      %18 = vector.load %arg10[%c0_18, %c0_19] : memref<16x128xf32, #tpu.memory_space<vmem>>, vector<16x128xf32>
      tpu.vector_store %arg10[%c0_18, %c0_19], %17 {strides = array<i32>} : memref<16x128xf32, #tpu.memory_space<vmem>>, vector<16x128xf32>,
      %cst_20 = arith.constant 0.000000e+00 : f32
      %19 = vector.broadcast %cst_20 : f32 to vector<16x4xf32>
      %c0_21 = arith.constant 0 : index
      %c0_22 = arith.constant 0 : index
      %20 = vector.load %arg11[%c0_21, %c0_22] : memref<16x4xf32, #tpu.memory_space<vmem>>, vector<16x4xf32>
      tpu.vector_store %arg11[%c0_21, %c0_22], %19 {strides = array<i32>} : memref<16x4xf32, #tpu.memory_space<vmem>>, vector<16x4xf32>,
    } else {
    }
    %c0 = arith.constant 0 : index
    %c0_1 = arith.constant 0 : index
    %3 = vector.load %arg4[%c0, %c0_1] : memref<16x128xf32, #tpu.memory_space<vmem>>, vector<16x128xf32>
    %c0_2 = arith.constant 0 : index
    %c0_3 = arith.constant 0 : index
    %4 = vector.load %arg10[%c0_2, %c0_3] : memref<16x128xf32, #tpu.memory_space<vmem>>, vector<16x128xf32>
    %c0_4 = arith.constant 0 : index
    %c0_5 = arith.constant 0 : index
    %5 = vector.load %arg5[%c0_4, %c0_5] : memref<128x128xf32, #tpu.memory_space<vmem>>, vector<128x128xf32>
    %cst = arith.constant dense<0.000000e+00> : vector<16x128xf32>
    %6 = tpu.matmul %3, %5, %cst {dimension_numbers = #tpu.dot_dimension_numbers<[1], [1], [0], [0], [0, 0, 1, 0], [], []>} : vector<16x128xf32>, vector<128x128xf32>, vector<16x128xf32> -> vector<16x128xf32>
    %7 = arith.addf %4, %6 : vector<16x128xf32>
    %c0_6 = arith.constant 0 : index
    %c0_7 = arith.constant 0 : index
    %8 = vector.load %arg10[%c0_6, %c0_7] : memref<16x128xf32, #tpu.memory_space<vmem>>, vector<16x128xf32>
    tpu.vector_store %arg10[%c0_6, %c0_7], %7 {strides = array<i32>} : memref<16x128xf32, #tpu.memory_space<vmem>>, vector<16x128xf32>,
    %c0_8 = arith.constant 0 : index
    %c0_9 = arith.constant 0 : index
    %9 = vector.load %arg11[%c0_8, %c0_9] : memref<16x4xf32, #tpu.memory_space<vmem>>, vector<16x4xf32>
    %c0_10 = arith.constant 0 : index
    %c0_11 = arith.constant 0 : index
    %10 = vector.load %arg7[%c0_10, %c0_11] : memref<128x4xf32, #tpu.memory_space<vmem>>, vector<128x4xf32>
    %cst_12 = arith.constant dense<0.000000e+00> : vector<16x4xf32>
    %11 = tpu.matmul %3, %10, %cst_12 {dimension_numbers = #tpu.dot_dimension_numbers<[1], [0], [0], [1], [0, 0, 1, 1], [], []>} : vector<16x128xf32>, vector<128x4xf32>, vector<16x4xf32> -> vector<16x4xf32>
    %12 = arith.addf %9, %11 : vector<16x4xf32>
    %c0_13 = arith.constant 0 : index
    %c0_14 = arith.constant 0 : index
    %13 = vector.load %arg11[%c0_13, %c0_14] : memref<16x4xf32, #tpu.memory_space<vmem>>, vector<16x4xf32>
    tpu.vector_store %arg11[%c0_13, %c0_14], %12 {strides = array<i32>} : memref<16x4xf32, #tpu.memory_space<vmem>>, vector<16x4xf32>,
    %c0_i32_15 = arith.constant 0 : i32
    %14 = arith.cmpi eq, %arg2, %c0_i32_15 : i32
    %15 = arith.extui %14 : i1 to i32
    %c0_i32_16 = arith.constant 0 : i32
    %16 = arith.cmpi ne, %15, %c0_i32_16 : i32
    scf.if %16 {
      %c0_17 = arith.constant 0 : index
      %c0_18 = arith.constant 0 : index
      %17 = memref.load %arg3[%c0_17, %c0_18] : memref<1x1xf32, #tpu.memory_space<smem>>
      %c0_19 = arith.constant 0 : index
      %c0_20 = arith.constant 0 : index
      %18 = vector.load %arg11[%c0_19, %c0_20] : memref<16x4xf32, #tpu.memory_space<vmem>>, vector<16x4xf32>
      %19 = vector.broadcast %17 : f32 to vector<16x4xf32>
      %20 = arith.mulf %19, %18 : vector<16x4xf32>
      %c0_21 = arith.constant 0 : index
      %c0_22 = arith.constant 0 : index
      %21 = vector.load %arg8[%c0_21, %c0_22] : memref<4x128xf32, #tpu.memory_space<vmem>>, vector<4x128xf32>
      %cst_23 = arith.constant dense<0.000000e+00> : vector<16x128xf32>
      %22 = tpu.matmul %20, %21, %cst_23 {dimension_numbers = #tpu.dot_dimension_numbers<[1], [0], [0], [1], [0, 0, 1, 1], [], []>} : vector<16x4xf32>, vector<4x128xf32>, vector<16x128xf32> -> vector<16x128xf32>
      %c0_24 = arith.constant 0 : index
      %c0_25 = arith.constant 0 : index
      %23 = vector.load %arg10[%c0_24, %c0_25] : memref<16x128xf32, #tpu.memory_space<vmem>>, vector<16x128xf32>
      %c0_26 = arith.constant 0 : index
      %c0_27 = arith.constant 0 : index
      %24 = vector.load %arg6[%c0_26, %c0_27] : memref<1x128xf32, #tpu.memory_space<vmem>>, vector<1x128xf32>
      %25 = vector.broadcast %24 : vector<1x128xf32> to vector<16x128xf32>
      %26 = arith.addf %23, %25 : vector<16x128xf32>
      %27 = arith.addf %26, %22 : vector<16x128xf32>
      %c0_28 = arith.constant 0 : index
      %c0_29 = arith.constant 0 : index
      %28 = vector.load %arg9[%c0_28, %c0_29] : memref<16x128xf32, #tpu.memory_space<vmem>>, vector<16x128xf32>
      tpu.vector_store %arg9[%c0_28, %c0_29], %27 {strides = array<i32>} : memref<16x128xf32, #tpu.memory_space<vmem>>, vector<16x128xf32>,
    } else {
    }
    return
  }
  func.func @transform_0(%arg0: i32, %arg1: i32, %arg2: i32) -> (i32, i32) {
    %c0_i32 = arith.constant 0 : i32
    %c0_i32_0 = arith.constant 0 : i32
    %c0_i32_1 = arith.constant 0 : i32
    return %c0_i32, %c0_i32_0 : i32, i32
  }
  func.func @transform_1(%arg0: i32, %arg1: i32, %arg2: i32) -> (i32, i32) {
    %c0_i32 = arith.constant 0 : i32
    return %arg0, %arg2 : i32, i32
  }
  func.func @transform_2(%arg0: i32, %arg1: i32, %arg2: i32) -> (i32, i32) {
    %c0_i32 = arith.constant 0 : i32
    return %arg1, %arg2 : i32, i32
  }
  func.func @transform_3(%arg0: i32, %arg1: i32, %arg2: i32) -> (i32, i32) {
    %c0_i32 = arith.constant 0 : i32
    %c0_i32_0 = arith.constant 0 : i32
    return %c0_i32, %arg1 : i32, i32
  }
  func.func @transform_4(%arg0: i32, %arg1: i32, %arg2: i32) -> (i32, i32) {
    %c0_i32 = arith.constant 0 : i32
    %c0_i32_0 = arith.constant 0 : i32
    return %arg2, %c0_i32 : i32, i32
  }
  func.func @transform_5(%arg0: i32, %arg1: i32, %arg2: i32) -> (i32, i32) {
    %c0_i32 = arith.constant 0 : i32
    %c0_i32_0 = arith.constant 0 : i32
    return %c0_i32, %arg1 : i32, i32
  }
  func.func @transform_6(%arg0: i32, %arg1: i32, %arg2: i32) -> (i32, i32) {
    %c0_i32 = arith.constant 0 : i32
    return %arg0, %arg1 : i32, i32
  }
}

</mosaic_0001>

<llo_original>
// kernel: tpu_custom_call.1
$region0: #{tpu_custom_call.1}
  #allocation0 [shape = 'u32[]', space=smem, size = 0x4, offset = 0x4, fixed_abs, tag = 'smem constant byte address 0x4 - core index']
  #allocation1 [shape = 'u32[72,128]{1,0:T(1,128)}', space=vmem, size = 0x9000, scoped, tag = 'internal scratch']
  #allocation2 [shape = 'f32[16,128]{1,0:T(8,128)}', space=vmem, size = 0x2000, scoped, tag = 'scratch operand']
  #allocation3 [shape = 'f32[16,4]{1,0:T(8,128)}', space=vmem, size = 0x2000, scoped, tag = 'scratch operand']
  #allocation4 [shape = 'f32[1,1]{1,0:T(1,128)S(6)}', space=smem, size = 0x200, scoped, tag = 'scoped memory for tpu_custom_call.1']
  %s0 = inlined_call_operand.<no memory space> [shape: f32[1,1], index: 0, kind: input, shape index: {}]
  %s1 = inlined_call_operand.hbm [shape: f32[16,128], index: 1, kind: input, shape index: {}]
  %s2 = inlined_call_operand.vmem [shape: f32[128,128], index: 2, kind: input, shape index: {}]
  %s3 = inlined_call_operand.hbm [shape: f32[1,128], index: 3, kind: input, shape index: {}]
  %s4 = inlined_call_operand.vmem [shape: f32[128,4], index: 4, kind: input, shape index: {}]
  %s5 = inlined_call_operand.vmem [shape: f32[4,128], index: 5, kind: input, shape index: {}]
  %s6 = inlined_call_operand.hbm [shape: f32[16,128], index: 6, kind: output, shape index: {}]
  %s7 = sld [smem:[#allocation0]]
  $region50: #{tpu_custom_call.1} parent=0
    _
  %s9 = ssub.s32 1, %s7
  %s10 = scalar_select 0, %s9, %s7
  %11 = sst [smem:[#allocation4]] %s0
  $region1: #{tpu_custom_call.1} parent=0
    #allocation5 [shape = 'u8[8192]{0}', space=vmem, size = 0x2000, scoped, tag = 'input window, operand 1, single buffered']
    #allocation6 [shape = 's32[1]{0}', space=sflag, size = 0x4, scoped, tag = 'scoped memory for tpu_custom_call.1']
    #allocation7 [shape = 's32[1]{0}', space=sflag, size = 0x4, scoped, tag = 'scoped memory for tpu_custom_call.1']
    #allocation8 [shape = 'u8[512]{0}', space=vmem, size = 0x400, scoped, tag = 'input window, operand 3, single buffered']
    #allocation9 [shape = 's32[1]{0}', space=sflag, size = 0x4, scoped, tag = 'scoped memory for tpu_custom_call.1']
    #allocation10 [shape = 'u8[8192]{0}', space=vmem, size = 0x2000, scoped, tag = 'output window, operand 0, single buffered']
    %12 = vsyncpa [#allocation6], 0
    %13 = vsyncpa [#allocation9], 0
    %14 = vsyncpa [#allocation7], 0
    // Predicated region
    $region2: #{tpu_custom_call.1} parent=1 // pred_check
      _
    $region3: #{tpu_custom_call.1} parent=1 // pred_check_branch
      %16 = sbr.rel (0) target = $region5
    $region4: #{tpu_custom_call.1} parent=1 // pred_region
      _
    $region5: #{tpu_custom_call.1} parent=1 // pred_fallthru
      _
    // Predicated region
    $region6: #{tpu_custom_call.1} parent=1 // pred_check
      _
    $region7: #{tpu_custom_call.1} parent=1 // pred_check_branch
      %18 = sbr.rel (0) target = $region9
    $region8: #{tpu_custom_call.1} parent=1 // pred_region
      %20 = vsyncadd [#allocation6], 0
      %s21 = sshll.u32 %s1, 4
      %s22 = int_to_ptr.hbm [resolvable:$true] %s21
      %s23 = sshll.u32 [#allocation5], 4
      %s24 = int_to_ptr.vmem [resolvable:$true] %s23
      %29 = dma.hbm_to_vmem [thread:$0]  %s22, 256, %s24, [#allocation6], 128, 128, 8
    $region9: #{tpu_custom_call.1} parent=1 // pred_fallthru
      _
    // Predicated region
    $region10: #{tpu_custom_call.1} parent=1 // pred_check
      _
    $region11: #{tpu_custom_call.1} parent=1 // pred_check_branch
      %31 = sbr.rel (0) target = $region13
    $region12: #{tpu_custom_call.1} parent=1 // pred_region
      _
    $region13: #{tpu_custom_call.1} parent=1 // pred_fallthru
      _
    // Predicated region
    $region14: #{tpu_custom_call.1} parent=1 // pred_check
      _
    $region15: #{tpu_custom_call.1} parent=1 // pred_check_branch
      %33 = sbr.rel (0) target = $region17
    $region16: #{tpu_custom_call.1} parent=1 // pred_region
      %35 = vsyncadd [#allocation9], 0
      %s37 = sshll.u32 %s3, 4
      %s38 = int_to_ptr.hbm [resolvable:$true] %s37
      %s39 = sshll.u32 [#allocation8], 4
      %s40 = int_to_ptr.vmem [resolvable:$true] %s39
      %42 = dma.hbm_to_vmem [thread:$0]  %s38, 16, %s40, [#allocation9]
    $region17: #{tpu_custom_call.1} parent=1 // pred_fallthru
      _
    // Predicated region
    $region18: #{tpu_custom_call.1} parent=1 // pred_check
      _
    $region19: #{tpu_custom_call.1} parent=1 // pred_check_branch
      %44 = sbr.rel (0) target = $region21
    $region20: #{tpu_custom_call.1} parent=1 // pred_region
      _
    $region21: #{tpu_custom_call.1} parent=1 // pred_fallthru
      _
    // Predicated region
    $region22: #{tpu_custom_call.1} parent=1 // pred_check
      _
    $region23: #{tpu_custom_call.1} parent=1 // pred_check_branch
      %46 = sbr.rel (0) target = $region25
    $region24: #{tpu_custom_call.1} parent=1 // pred_region
      _
    $region25: #{tpu_custom_call.1} parent=1 // pred_fallthru
      _
    // Predicated region
    $region26: #{tpu_custom_call.1} parent=1 // pred_check
      _
    $region27: #{tpu_custom_call.1} parent=1 // pred_check_branch
      %48 = sbr.rel (0) target = $region29
    $region28: #{tpu_custom_call.1} parent=1 // pred_region
      %50 = dma.done [#allocation6], 256
    $region29: #{tpu_custom_call.1} parent=1 // pred_fallthru
      _
    // Predicated region
    $region30: #{tpu_custom_call.1} parent=1 // pred_check
      _
    $region31: #{tpu_custom_call.1} parent=1 // pred_check_branch
      %52 = sbr.rel (0) target = $region33
    $region32: #{tpu_custom_call.1} parent=1 // pred_region
      %54 = dma.done [#allocation9], 16
    $region33: #{tpu_custom_call.1} parent=1 // pred_fallthru
      _
    %p55 = scmp.eq.s32.totalorder 0, 0
    // Predicated region
    $region34: #{tpu_custom_call.1} parent=1 // pred_check
      %p56 = pneg %p55
    $region35: #{tpu_custom_call.1} parent=1 // pred_check_branch
      %58 = sbr.rel (%p56) target = $region37
    $region36: #{tpu_custom_call.1} parent=1 // pred_region
      %59 = vst [vmem:[#allocation2] sm:$0xff] 0.0
      %60 = vst [vmem:[#allocation2 + $0x8] sm:$0xff] 0.0
      %vm61 = vcmask 31744
      %62 = vst.msk [vmem:[#allocation3] sm:$0xff] %vm61, 0.0
      %63 = vst.msk [vmem:[#allocation3 + $0x8] sm:$0xff] %vm61, 0.0
    $region37: #{tpu_custom_call.1} parent=1 // pred_fallthru
      _
    %v64 = vld [vmem:[#allocation5] sm:$0xff]
    %v65 = vld [vmem:[#allocation5 + $0x8] sm:$0xff]
    %v66 = vld [vmem:[#allocation2] sm:$0xff]
    %v67 = vld [vmem:[#allocation2 + $0x8] sm:$0xff]
    %v68 = vld [vmem:[%s2] sm:$0xff]
    %v69 = vld [vmem:[%s2 + $0x8] sm:$0xff]
    %v70 = vld [vmem:[%s2 + $0x10] sm:$0xff]
    %v71 = vld [vmem:[%s2 + $0x18] sm:$0xff]
    %v72 = vld [vmem:[%s2 + $0x20] sm:$0xff]
    %v73 = vld [vmem:[%s2 + $0x28] sm:$0xff]
    %v74 = vld [vmem:[%s2 + $0x30] sm:$0xff]
    %v75 = vld [vmem:[%s2 + $0x38] sm:$0xff]
    %v76 = vld [vmem:[%s2 + $0x40] sm:$0xff]
    %v77 = vld [vmem:[%s2 + $0x48] sm:$0xff]
    %v78 = vld [vmem:[%s2 + $0x50] sm:$0xff]
    %v79 = vld [vmem:[%s2 + $0x58] sm:$0xff]
    %v80 = vld [vmem:[%s2 + $0x60] sm:$0xff]
    %v81 = vld [vmem:[%s2 + $0x68] sm:$0xff]
    %v82 = vld [vmem:[%s2 + $0x70] sm:$0xff]
    %v83 = vld [vmem:[%s2 + $0x78] sm:$0xff]
    %84 = vmatpush.xpose.msra.mxu0 %v83
    %85 = vmatpush.xpose.msra.mxu0 %v82
    %86 = vmatpush.xpose.msra.mxu0 %v81
    %87 = vmatpush.xpose.msra.mxu0 %v80
    %88 = vmatpush.xpose.msra.mxu0 %v79
    %89 = vmatpush.xpose.msra.mxu0 %v78
    %90 = vmatpush.xpose.msra.mxu0 %v77
    %91 = vmatpush.xpose.msra.mxu0 %v76
    %92 = vmatpush.xpose.msra.mxu0 %v75
    %93 = vmatpush.xpose.msra.mxu0 %v74
    %94 = vmatpush.xpose.msra.mxu0 %v73
    %95 = vmatpush.xpose.msra.mxu0 %v72
    %96 = vmatpush.xpose.msra.mxu0 %v71
    %97 = vmatpush.xpose.msra.mxu0 %v70
    %98 = vmatpush.xpose.msra.mxu0 %v69
    %99 = vmatpush.xpose.msra.mxu0 %v68
    %100 = vmatmul.f32.gmra.mxu0 %v64
    %v101 = vpop.f32.mrf.mxu0
    %v102 = vadd.f32 0.0, %v101
    %103 = vmatmul.f32.gmra.mxu0 %v65
    %v104 = vpop.f32.mrf.mxu0
    %v105 = vadd.f32 0.0, %v104
    %106 = vdwg.mxu0
    %v107 = vadd.f32 %v66, %v102
    %v108 = vadd.f32 %v67, %v105
    %109 = vst [vmem:[#allocation2] sm:$0xff] %v107
    %110 = vst [vmem:[#allocation2 + $0x8] sm:$0xff] %v108
    %v111 = vld [vmem:[#allocation3] sm:$0xff]
    %v112 = vld [vmem:[#allocation3 + $0x8] sm:$0xff]
    %v113 = vld [vmem:[%s4] sm:$0xff]
    %v114 = vld [vmem:[%s4 + $0x8] sm:$0xff]
    %v115 = vld [vmem:[%s4 + $0x10] sm:$0xff]
    %v116 = vld [vmem:[%s4 + $0x18] sm:$0xff]
    %v117 = vld [vmem:[%s4 + $0x20] sm:$0xff]
    %v118 = vld [vmem:[%s4 + $0x28] sm:$0xff]
    %v119 = vld [vmem:[%s4 + $0x30] sm:$0xff]
    %v120 = vld [vmem:[%s4 + $0x38] sm:$0xff]
    %v121 = vld [vmem:[%s4 + $0x40] sm:$0xff]
    %v122 = vld [vmem:[%s4 + $0x48] sm:$0xff]
    %v123 = vld [vmem:[%s4 + $0x50] sm:$0xff]
    %v124 = vld [vmem:[%s4 + $0x58] sm:$0xff]
    %v125 = vld [vmem:[%s4 + $0x60] sm:$0xff]
    %v126 = vld [vmem:[%s4 + $0x68] sm:$0xff]
    %v127 = vld [vmem:[%s4 + $0x70] sm:$0xff]
    %v128 = vld [vmem:[%s4 + $0x78] sm:$0xff]
    %129 = vmatpush.msra.mxu0 %v128
    %130 = vmatpush.msra.mxu0 %v127
    %131 = vmatpush.msra.mxu0 %v126
    %132 = vmatpush.msra.mxu0 %v125
    %133 = vmatpush.msra.mxu0 %v124
    %134 = vmatpush.msra.mxu0 %v123
    %135 = vmatpush.msra.mxu0 %v122
    %136 = vmatpush.msra.mxu0 %v121
    %137 = vmatpush.msra.mxu0 %v120
    %138 = vmatpush.msra.mxu0 %v119
    %139 = vmatpush.msra.mxu0 %v118
    %140 = vmatpush.msra.mxu0 %v117
    %141 = vmatpush.msra.mxu0 %v116
    %142 = vmatpush.msra.mxu0 %v115
    %143 = vmatpush.msra.mxu0 %v114
    %144 = vmatpush.msra.mxu0 %v113
    %145 = vmatmul.f32.gmra.mxu0 %v64
    %v146 = vpop.f32.mrf.mxu0
    %v147 = vadd.f32 0.0, %v146
    %148 = vmatmul.f32.gmra.mxu0 %v65
    %v149 = vpop.f32.mrf.mxu0
    %v150 = vadd.f32 0.0, %v149
    %151 = vdwg.mxu0
    %v152 = vadd.f32 %v111, %v147
    %v153 = vadd.f32 %v112, %v150
    %vm154 = vcmask 31744
    %155 = vst.msk [vmem:[#allocation3] sm:$0xff] %vm154, %v152
    %156 = vst.msk [vmem:[#allocation3 + $0x8] sm:$0xff] %vm154, %v153
    // Predicated region
    $region38: #{tpu_custom_call.1} parent=1 // pred_check
      %p157 = pneg %p55
    $region39: #{tpu_custom_call.1} parent=1 // pred_check_branch
      %159 = sbr.rel (%p157) target = $region41
    $region40: #{tpu_custom_call.1} parent=1 // pred_region
      %s160 = sld [smem:[#allocation4]]
      %v161 = vld [vmem:[#allocation3] sm:$0xff]
      %v162 = vld [vmem:[#allocation3 + $0x8] sm:$0xff]
      %v163 = vstv %s160
      %v164 = vmul.f32 %v163, %v161
      %v165 = vmul.f32 %v163, %v162
      %v166 = vld [vmem:[%s5] sm:$0xf]
      %v168 = vsel %vm154, %v164, 0
      %v171 = vsel %vm154, %v165, 0
      %vm173 = vcmask 1043456
      %v175 = vsel %vm173, %v166, 0
      %177 = vmatpush.msra.mxu0 0.0
      %178 = vmatpush.msra.mxu0 0.0
      %179 = vmatpush.msra.mxu0 0.0
      %180 = vmatpush.msra.mxu0 0.0
      %181 = vmatpush.msra.mxu0 0.0
      %182 = vmatpush.msra.mxu0 0.0
      %183 = vmatpush.msra.mxu0 0.0
      %184 = vmatpush.msra.mxu0 0.0
      %185 = vmatpush.msra.mxu0 0.0
      %186 = vmatpush.msra.mxu0 0.0
      %187 = vmatpush.msra.mxu0 0.0
      %188 = vmatpush.msra.mxu0 0.0
      %189 = vmatpush.msra.mxu0 0.0
      %190 = vmatpush.msra.mxu0 0.0
      %191 = vmatpush.msra.mxu0 0.0
      %192 = vmatpush.msra.mxu0 %v175
      %193 = vmatmul.f32.gmra.mxu0 %v168
      %v194 = vpop.f32.mrf.mxu0
      %v195 = vadd.f32 0.0, %v194
      %196 = vmatmul.f32.gmra.mxu0 %v171
      %v197 = vpop.f32.mrf.mxu0
      %v198 = vadd.f32 0.0, %v197
      %199 = vdwg.mxu0
      %v200 = vld [vmem:[#allocation2] sm:$0xff]
      %v201 = vld [vmem:[#allocation2 + $0x8] sm:$0xff]
      %v202 = vld [vmem:[#allocation8] sm:$0x1]
      %v204 = vperm.slane %v202, 0
      %v206 = vadd.f32 %v200, %v204
      %v207 = vadd.f32 %v201, %v204
      %v208 = vadd.f32 %v206, %v195
      %v209 = vadd.f32 %v207, %v198
      %210 = vst [vmem:[#allocation10] sm:$0xff] %v208
      %211 = vst [vmem:[#allocation10 + $0x8] sm:$0xff] %v209
    $region41: #{tpu_custom_call.1} parent=1 // pred_fallthru
      _
    // Predicated region
    $region42: #{tpu_custom_call.1} parent=1 // pred_check
      _
    $region43: #{tpu_custom_call.1} parent=1 // pred_check_branch
      %213 = sbr.rel (0) target = $region45
    $region44: #{tpu_custom_call.1} parent=1 // pred_region
      %215 = vsyncadd [#allocation7], 0
      %s216 = sshll.u32 [#allocation10], 4
      %s217 = int_to_ptr.vmem [resolvable:$true] %s216
      %s218 = sshll.u32 %s6, 4
      %s219 = int_to_ptr.hbm [resolvable:$true] %s218
      %224 = dma.vmem_to_hbm [thread:$0]  %s217, 256, %s219, [#allocation7], 128, 128, 8
    $region45: #{tpu_custom_call.1} parent=1 // pred_fallthru
      _
    // Predicated region
    $region46: #{tpu_custom_call.1} parent=1 // pred_check
      _
    $region47: #{tpu_custom_call.1} parent=1 // pred_check_branch
      %226 = sbr.rel (0) target = $region49
    $region48: #{tpu_custom_call.1} parent=1 // pred_region
      %228 = dma.done [#allocation7], 256
    $region49: #{tpu_custom_call.1} parent=1 // pred_fallthru
      _
    %229 = vsyncpa [#allocation6], 1
    %230 = vsyncpa [#allocation9], 1
    %231 = vsyncpa [#allocation7], 1

</llo_original>
